<compile_context>
chip_gen: v6e
topology: v6e:2x2x1
jax: 0.10.0
libtpu: 0.0.40
codegen_flags: <defaults>
</compile_context>

<pallas_src>
import jax
import jax.numpy as jnp
from jax import lax
from jax.experimental import pallas as pl
from jax.experimental.pallas import tpu as pltpu


def _round_up(a, b):
    return (a + b - 1) // b * b


def _make_tv_kernel(h, w, l):
    """Kernel factory: raw (un-normalized) h/w TV partial sums for one block."""

    def kernel(x_ref, out_ref):
        x = x_ref[...].astype(jnp.float32)            # (p, l) lane-dense planes

        if h > 1:
            # vertical neighbours: flat pairs (i, i+w), all valid for i < l - w
            dh = x[:, w:] - x[:, : l - w]
            h_part = jnp.sum(dh * dh)
        else:
            h_part = jnp.float32(0.0)

        if w > 1:
            # horizontal neighbours: flat pairs (i, i+1), invalid at the last
            # column of each image row (col % w == w - 1)
            dwf = x[:, 1:] - x[:, : l - 1]
            col = lax.broadcasted_iota(jnp.int32, (x.shape[0], l - 1), 1)
            dw = jnp.where(col % w != w - 1, dwf, jnp.float32(0.0))
            w_part = jnp.sum(dw * dw)
        else:
            w_part = jnp.float32(0.0)

        # Lane-dense (2, 128) partial-sum tile: row 0 -> h_tv, row 1 -> w_tv.
        out_ref[...] = jnp.concatenate(
            [jnp.full((1, 128), h_part, jnp.float32),
             jnp.full((1, 128), w_part, jnp.float32)], axis=0)[None]

    return kernel


def _choose_blocking(n_planes, l, in_itemsize, vmem_budget=24 * 1024 * 1024):
    """Pick (num_blocks, real planes per block, padded planes per block)."""
    lane_l = _round_up(max(l, 1), 128)                # lane-padded plane bytes
    # 2x double-buffered input block (HBM dtype) + ~4 block-sized f32
    # intermediates (x upcast, shifted copies, diffs/squares).
    per_plane = 2 * lane_l * in_itemsize + 4 * lane_l * 4
    p_cap = max(8, (vmem_budget // per_plane) // 8 * 8)   # multiple of 8
    # TODO(synk): split the flattened H*W axis (with a W-element halo) when a
    # single 8-plane block exceeds the VMEM budget (very large images).

    # At least 2 (and an even number of) grid blocks whenever there are >= 2
    # planes, so the "parallel" grid dimension can use both v7x TensorCores.
    min_blocks = 2 if n_planes >= 2 else 1
    num_blocks = max(min_blocks, pl.cdiv(n_planes, p_cap))
    if n_planes >= 2 and num_blocks % 2 == 1:
        num_blocks += 1

    chunk = pl.cdiv(n_planes, num_blocks)             # real planes per block
    p = _round_up(chunk, 8)                           # sublane-aligned height
    return num_blocks, chunk, p


def l_tv_loss(x, tv_weight=1.0):
    """TV loss matching the PyTorch L_TV.forward semantics. x: (B, C, H, W)."""
    b, c, h, w = x.shape
    count_h = (h - 1) * w
    count_w = h * (w - 1)
    n_planes = b * c
    l = h * w

    x_flat = x.reshape(n_planes, l)      # free view of contiguous NCHW memory

    num_blocks, chunk, p = _choose_blocking(n_planes, l, x.dtype.itemsize)

    # Distribute real planes evenly over the grid blocks; zero padding planes
    # contribute exactly 0 to both TV sums.
    n_need = num_blocks * chunk
    if n_need != n_planes:
        x_flat = jnp.concatenate(
            [x_flat, jnp.zeros((n_need - n_planes, l), x_flat.dtype)], axis=0)
    x_blocks = x_flat.reshape(num_blocks, chunk, l)
    if p != chunk:
        x_blocks = jnp.pad(x_blocks, ((0, 0), (0, p - chunk), (0, 0)))
    x_in = x_blocks.reshape(num_blocks * p, l)

    flops = 7 * n_planes * l
    bytes_accessed = (num_blocks * p * l * x.dtype.itemsize
                      + num_blocks * 2 * 128 * 4)

    partials = pl.pallas_call(
        _make_tv_kernel(h, w, l),
        out_shape=jax.ShapeDtypeStruct((num_blocks, 2, 128), jnp.float32),
        grid_spec=pltpu.PrefetchScalarGridSpec(
            num_scalar_prefetch=0,
            grid=(num_blocks,),
            in_specs=[pl.BlockSpec((p, l), lambda i: (i, 0))],
            out_specs=pl.BlockSpec((1, 2, 128), lambda i: (i, 0, 0)),
        ),
        compiler_params=pltpu.CompilerParams(
            dimension_semantics=("parallel",),   # independent per-block partials
            vmem_limit_bytes=32 * 1024 * 1024,
        ),
        cost_estimate=pl.CostEstimate(
            flops=int(flops),
            transcendentals=0,
            bytes_accessed=int(bytes_accessed),
        ),
    )(x_in)

    h_tv = jnp.sum(partials[:, 0, 0])
    w_tv = jnp.sum(partials[:, 1, 0])

    # All normalization / scaling applied exactly once, outside the hot loop.
    # (count_h / count_w can be 0 if H==1 or W==1 -- same inf/nan as PyTorch.)
    return tv_weight * 2.0 * (h_tv / count_h + w_tv / count_w) / b


def _l_tv_ref(x, tv_weight=1.0):
    """Pure-JAX reference mirroring the PyTorch code."""
    b, c, h, w = x.shape
    count_h = (h - 1) * w
    count_w = h * (w - 1)
    h_tv = jnp.sum(jnp.square(x[:, :, 1:, :] - x[:, :, : h - 1, :]))
    w_tv = jnp.sum(jnp.square(x[:, :, :, 1:] - x[:, :, :, : w - 1]))
    return tv_weight * 2.0 * (h_tv / count_h + w_tv / count_w) / b


if __name__ == "__main__":
    key = jax.random.PRNGKey(0)
    x = jax.random.uniform(key, (2, 4, 16, 16), dtype=jnp.float32)

    loss = jax.block_until_ready(l_tv_loss(x, tv_weight=1.0))
    ref = jax.block_until_ready(_l_tv_ref(x, tv_weight=1.0))

    assert jnp.allclose(loss, ref, rtol=1e-5, atol=1e-6), (loss, ref)
    print("KERNEL_OK")
</pallas_src>

<mosaic_0001>
module attributes {stable_mosaic.version = 11 : i64} {
  func.func @kernel(%arg0: i32, %arg1: memref<8x256xf32, #tpu.memory_space<vmem>>, %arg2: memref<1x2x128xf32, #tpu.memory_space<vmem>>) attributes {dimension_semantics = [#tpu.dimension_semantics<parallel>], iteration_bounds = array<i64: 2>, scalar_prefetch = 0 : i64, scratch_operands = 0 : i64, tpu.core_type = #tpu.core_type<tc>, window_params = [{transform_indices = @transform_0, window_bounds = array<i64: 8, 256>}, {transform_indices = @transform_1, window_bounds = array<i64: 1, 2, 128>}]} {
    %c0 = arith.constant 0 : index
    %c0_0 = arith.constant 0 : index
    %0 = vector.load %arg1[%c0, %c0_0] : memref<8x256xf32, #tpu.memory_space<vmem>>, vector<8x256xf32>
    %1 = vector.extract_strided_slice %0 {offsets = [0, 16], sizes = [8, 240], strides = [1, 1]} : vector<8x256xf32> to vector<8x240xf32>
    %2 = vector.extract_strided_slice %0 {offsets = [0, 0], sizes = [8, 240], strides = [1, 1]} : vector<8x256xf32> to vector<8x240xf32>
    %3 = arith.subf %1, %2 : vector<8x240xf32>
    %4 = arith.mulf %3, %3 : vector<8x240xf32>
    %5 = vector.shape_cast %4 : vector<8x240xf32> to vector<1x8x240xf32>
    %cst = arith.constant dense<0.000000e+00> : vector<1xf32>
    %6 = vector.multi_reduction <add>, %5, %cst [1, 2] : vector<1x8x240xf32> to vector<1xf32>
    %7 = vector.shape_cast %6 : vector<1xf32> to vector<1x1x1xf32>
    %8 = vector.extract %7[0, 0, 0] : f32 from vector<1x1x1xf32>
    %9 = vector.extract_strided_slice %0 {offsets = [0, 1], sizes = [8, 255], strides = [1, 1]} : vector<8x256xf32> to vector<8x255xf32>
    %10 = vector.extract_strided_slice %0 {offsets = [0, 0], sizes = [8, 255], strides = [1, 1]} : vector<8x256xf32> to vector<8x255xf32>
    %11 = arith.subf %9, %10 : vector<8x255xf32>
    %12 = tpu.iota {dimensions = array<i32: 1>} : vector<8x255xi32>
    %c16_i32 = arith.constant 16 : i32
    %c0_i32 = arith.constant 0 : i32
    %13 = arith.cmpi eq, %c16_i32, %c0_i32 : i32
    %c1_i32 = arith.constant 1 : i32
    %14 = arith.select %13, %c1_i32, %c16_i32 : i32
    %15 = vector.broadcast %14 : i32 to vector<8x255xi32>
    %16 = arith.remsi %12, %15 : vector<8x255xi32>
    %c0_i32_1 = arith.constant 0 : i32
    %17 = vector.broadcast %c0_i32_1 : i32 to vector<8x255xi32>
    %18 = arith.cmpi ne, %16, %17 : vector<8x255xi32>
    %c0_i32_2 = arith.constant 0 : i32
    %19 = vector.broadcast %c0_i32_2 : i32 to vector<8x255xi32>
    %20 = arith.cmpi slt, %16, %19 : vector<8x255xi32>
    %c0_i32_3 = arith.constant 0 : i32
    %21 = arith.cmpi slt, %14, %c0_i32_3 : i32
    %22 = vector.broadcast %21 : i1 to vector<8x255xi1>
    %23 = vector.broadcast %22 : vector<8x255xi1> to vector<8x255xi1>
    %24 = arith.xori %20, %23 : vector<8x255xi1>
    %25 = arith.andi %24, %18 : vector<8x255xi1>
    %26 = vector.broadcast %14 : i32 to vector<8x255xi32>
    %27 = arith.addi %16, %26 : vector<8x255xi32>
    %28 = arith.select %25, %27, %16 : vector<8x255xi1>, vector<8x255xi32>
    %c15_i32 = arith.constant 15 : i32
    %29 = vector.broadcast %c15_i32 : i32 to vector<8x255xi32>
    %30 = arith.cmpi ne, %28, %29 : vector<8x255xi32>
    %cst_4 = arith.constant 0.000000e+00 : f32
    %31 = vector.broadcast %cst_4 : f32 to vector<8x255xf32>
    %32 = arith.select %30, %11, %31 : vector<8x255xi1>, vector<8x255xf32>
    %33 = arith.mulf %32, %32 : vector<8x255xf32>
    %34 = vector.shape_cast %33 : vector<8x255xf32> to vector<1x8x255xf32>
    %cst_5 = arith.constant dense<0.000000e+00> : vector<1xf32>
    %35 = vector.multi_reduction <add>, %34, %cst_5 [1, 2] : vector<1x8x255xf32> to vector<1xf32>
    %36 = vector.shape_cast %35 : vector<1xf32> to vector<1x1x1xf32>
    %37 = vector.extract %36[0, 0, 0] : f32 from vector<1x1x1xf32>
    %38 = vector.broadcast %8 : f32 to vector<1x128xf32>
    %39 = vector.broadcast %37 : f32 to vector<1x128xf32>
    %40 = tpu.concatenate %38, %39 in 0 : vector<1x128xf32>, vector<1x128xf32> -> vector<2x128xf32>
    %41 = vector.shape_cast %40 : vector<2x128xf32> to vector<1x2x128xf32>
    %c0_6 = arith.constant 0 : index
    %c0_7 = arith.constant 0 : index
    %c0_8 = arith.constant 0 : index
    %42 = vector.load %arg2[%c0_6, %c0_7, %c0_8] : memref<1x2x128xf32, #tpu.memory_space<vmem>>, vector<1x2x128xf32>
    tpu.vector_store %arg2[%c0_6, %c0_7, %c0_8], %41 {strides = array<i32>} : memref<1x2x128xf32, #tpu.memory_space<vmem>>, vector<1x2x128xf32>,
    return
  }
  func.func @transform_0(%arg0: i32) -> (i32, i32) {
    %c0_i32 = arith.constant 0 : i32
    %c0_i32_0 = arith.constant 0 : i32
    return %arg0, %c0_i32 : i32, i32
  }
  func.func @transform_1(%arg0: i32) -> (i32, i32, i32) {
    %c0_i32 = arith.constant 0 : i32
    %c0_i32_0 = arith.constant 0 : i32
    %c0_i32_1 = arith.constant 0 : i32
    return %arg0, %c0_i32, %c0_i32_0 : i32, i32, i32
  }
}

</mosaic_0001>

<llo_original>
// kernel: tpu_custom_call.1
$region0: #{tpu_custom_call.1}
  #allocation0 [shape = 'u32[]', space=smem, size = 0x4, offset = 0x4, fixed_abs, tag = 'smem constant byte address 0x4 - core index']
  #allocation1 [shape = 'u32[144,128]{1,0:T(1,128)}', space=vmem, size = 0x12000, scoped, tag = 'internal scratch']
  %s0 = inlined_call_operand.hbm [shape: f32[16,256], index: 0, kind: input, shape index: {}]
  %s1 = inlined_call_operand.hbm [shape: f32[2,2,128], index: 1, kind: output, shape index: {}]
  %s2 = sld [smem:[#allocation0]]
  $region41: #{tpu_custom_call.1} parent=0
    _
  %s4 = ssub.s32 1, %s2
  %s5 = scalar_select 0, %s4, %s2
  $region1: #{tpu_custom_call.1} parent=0
    #allocation2 [shape = 'u8[16384]{0}', space=vmem, size = 0x4000, scoped, tag = 'input window, operand 0']
    #allocation3 [shape = 's32[2]{0}', space=sflag, size = 0x8, scoped, tag = 'scoped memory for tpu_custom_call.1']
    #allocation4 [shape = 's32[2]{0}', space=sflag, size = 0x8, scoped, tag = 'scoped memory for tpu_custom_call.1']
    #allocation5 [shape = 'u8[2048]{0}', space=vmem, size = 0x800, scoped, tag = 'output window, operand 0']
    %6 = vsyncpa [#allocation3], 0
    %s7 = scalar_lea.sflag [#allocation3], 1
    %8 = vsyncpa %s7, 0
    %9 = vsyncpa [#allocation4], 0
    %s10 = scalar_lea.sflag [#allocation4], 1
    %11 = vsyncpa %s10, 0
    loop: start=0, step=1, limit=4
    $region2: #{tpu_custom_call.1} parent=1 // loop_pre_header
      _
    $region3: #{tpu_custom_call.1} parent=1 // loop_header
      %s13 = sphi 0, %s17
      %p14 = scmp.ge.s32.totalorder %s13, 4
      %s23 = sphi 0, %s25
      %s26 = sphi 0, %s23
      %s27 = sphi 0, %s26
      %s43 = sphi 0, %s27
      %s49 = sphi 0, %s51
      %s52 = sphi 0, %s49
      %s53 = sphi 0, %s52
      %s69 = sphi 0, %s53
    $region4: #{tpu_custom_call.1} parent=1 // loop_header_branch
      %16 = sbr.rel (%p14) target = $region8
    $region5: #{tpu_custom_call.1} parent=1 // loop_body
      %s18 = ssub.s32 %s13, 1
      %s19 = ssub.s32 %s13, 2
      %s20 = sadd.s32 %s13, 1
      %s21 = ssub.s32 %s13, %s20
      %p22 = scmp.eq.s32.totalorder %s21, 0
      %s24 = sadd.s32 %s23, 1
      %s25 = scalar_select %p22, %s23, %s24
      %p28 = pneg %p22
      %p29 = scmp.eq.s32.totalorder %s13, 1
      %p30 = por %p28, %p29
      %p31 = scmp.ne.s32.totalorder %s23, %s26
      %p32 = scmp.eq.s32.totalorder %s13, 0
      %p33 = por %p31, %p32
      %p34 = scmp.ne.s32.totalorder %s23, %s26
      %p35 = scmp.eq.s32.totalorder %s18, 1
      %p36 = por %p34, %p35
      %p37 = scmp.ne.s32.totalorder %s26, %s27
      %p38 = scmp.eq.s32.totalorder %s18, 0
      %p39 = por %p37, %p38
      %p40 = scmp.ne.s32.totalorder %s26, %s27
      %p41 = scmp.eq.s32.totalorder %s19, 1
      %p42 = por %p40, %p41
      %p44 = scmp.ne.s32.totalorder %s27, %s43
      %p45 = scmp.eq.s32.totalorder %s19, 0
      %p46 = por %p44, %p45
      %s47 = ssub.s32 %s13, %s20
      %p48 = scmp.eq.s32.totalorder %s47, 0
      %s50 = sadd.s32 %s49, 1
      %s51 = scalar_select %p48, %s49, %s50
      %p54 = pneg %p48
      %p55 = scmp.eq.s32.totalorder %s13, 1
      %p56 = por %p54, %p55
      %p57 = scmp.ne.s32.totalorder %s49, %s52
      %p58 = scmp.eq.s32.totalorder %s13, 0
      %p59 = por %p57, %p58
      %p60 = scmp.ne.s32.totalorder %s49, %s52
      %p61 = scmp.eq.s32.totalorder %s18, 1
      %p62 = por %p60, %p61
      %p63 = scmp.ne.s32.totalorder %s52, %s53
      %p64 = scmp.eq.s32.totalorder %s18, 0
      %p65 = por %p63, %p64
      %p66 = scmp.ne.s32.totalorder %s52, %s53
      %p67 = scmp.eq.s32.totalorder %s19, 1
      %p68 = por %p66, %p67
      %p70 = scmp.ne.s32.totalorder %s53, %s69
      %p71 = scmp.eq.s32.totalorder %s19, 0
      %p72 = por %p70, %p71
      %p73 = scmp.le.s32.totalorder 1, %s13
      %p74 = scmp.lt.s32.totalorder %s13, 3
      %p75 = pnand %p73, %p74
      %p76 = pneg %p75
      // Predicated region
      $region9: #{tpu_custom_call.1} parent=5 // pred_check
        _
      $region10: #{tpu_custom_call.1} parent=5 // pred_check_branch
        %78 = sbr.rel (%p75) target = $region12
      $region11: #{tpu_custom_call.1} parent=5 // pred_region
        %s79 = ssub.s32 %s13, 1
      $region12: #{tpu_custom_call.1} parent=5 // pred_fallthru
        _
      %p80 = scmp.lt.s32.totalorder %s13, 2
      // Predicated region
      $region13: #{tpu_custom_call.1} parent=5 // pred_check
        %p81 = pneg %p80
      $region14: #{tpu_custom_call.1} parent=5 // pred_check_branch
        %83 = sbr.rel (%p81) target = $region16
      $region15: #{tpu_custom_call.1} parent=5 // pred_region
        // Predicated region
        $region17: #{tpu_custom_call.1} parent=15 // pred_check
          %p84 = pneg %p33
        $region18: #{tpu_custom_call.1} parent=15 // pred_check_branch
          %86 = sbr.rel (%p84) target = $region20
        $region19: #{tpu_custom_call.1} parent=15 // pred_region
          %s87 = sand.u32 %s23, 1
          %s88 = scalar_lea.sflag [#allocation3], %s87
          %s89 = sand.u32 %s23, 1
          %s90 = smul.addr %s89, 16
          %s91 = scalar_lea.vmem [#allocation2], %s90
          %s93 = ssub.s32 256, 256
          %94 = vsyncadd %s88, %s93
          %s95 = smul.addr %s13, 2
          %s96 = smul.addr %s95, 128
          %s97 = scalar_lea.hbm %s0, %s96
          %s99 = sshll.u32 %s91, 4
          %s100 = int_to_ptr.vmem [resolvable:$true] %s99
          %102 = dma.hbm_to_vmem [thread:$0]  %s97, 256, %s100, %s88
        $region20: #{tpu_custom_call.1} parent=15 // pred_fallthru
          _
      $region16: #{tpu_custom_call.1} parent=5 // pred_fallthru
        _
      %p103 = scmp.le.s32.totalorder 1, %s13
      %p104 = scmp.lt.s32.totalorder %s13, 3
      %p105 = pnand %p103, %p104
      %p106 = pneg %p105
      // Predicated region
      $region21: #{tpu_custom_call.1} parent=5 // pred_check
        _
      $region22: #{tpu_custom_call.1} parent=5 // pred_check_branch
        %108 = sbr.rel (%p105) target = $region24
      $region23: #{tpu_custom_call.1} parent=5 // pred_region
        %s109 = ssub.s32 %s13, 1
        %s110 = sand.u32 %s26, 1
        %s111 = scalar_lea.sflag [#allocation3], %s110
        %s112 = sand.u32 %s26, 1
        %s113 = smul.addr %s112, 16
        %s114 = scalar_lea.vmem [#allocation2], %s113
        // Predicated region
        $region25: #{tpu_custom_call.1} parent=23 // pred_check
          %p115 = pneg %p39
        $region26: #{tpu_custom_call.1} parent=23 // pred_check_branch
          %117 = sbr.rel (%p115) target = $region28
        $region27: #{tpu_custom_call.1} parent=23 // pred_region
          %118 = dma.done %s111, 256
        $region28: #{tpu_custom_call.1} parent=23 // pred_fallthru
          _
        %s119 = sand.u32 %s26, 1
        %s120 = scalar_lea.sflag [#allocation3], %s119
        %s121 = sand.u32 %s26, 1
        %s122 = smul.addr %s121, 16
        %s123 = scalar_lea.vmem [#allocation2], %s122
        %p124 = pneg %p39
        %p125 = pneg %p36
        %p126 = pneg %p65
        %p127 = pneg %p62
        %s128 = sand.u32 %s52, 1
        %s129 = scalar_lea.sflag [#allocation4], %s128
        %s130 = sand.u32 %s52, 1
        %s131 = smul.addr %s130, 2
        %s132 = scalar_lea.vmem [#allocation5], %s131
        %v133 = vld [vmem:[%s114] sm:$0xff]
        %v134 = vld [vmem:[%s114 + $0x8] sm:$0xff]
        %137 = vrot.lane.b32.xlu0 %v133, 16
        %v138 = vpop.permute.xlu0 %137
        %139 = vrot.lane.b32.xlu0 %v134, 16
        %v140 = vpop.permute.xlu0 %139
        %vm141 = vcmask 130048
        %v142 = vsel %vm141, %v138, %v140
        %v145 = vsub.f32 %v133, %v138
        %v146 = vsub.f32 %v134, %v142
        %v147 = vmul.f32 %v145, %v145
        %v148 = vmul.f32 %v146, %v146
        %151 = vrot.lane.b32.xlu0 %v147, 112
        %v152 = vpop.permute.xlu0 %151
        %153 = vrot.lane.b32.xlu0 %v148, 112
        %v154 = vpop.permute.xlu0 %153
        %vm155 = vcmask 916480
        %v156 = vsel %vm155, %v152, %v154
        %v159 = vsel %vm155, %v154, 0.0
        %v160 = vadd.f32 %v156, %v159
        %161 = vadd.xlane.f32.xlu0 %v160
        %v162 = vpop.xlane.xlu0 %161
        %v163 = vrot.slane %v162, 4
        %v164 = vadd.f32 %v162, %v163
        %v165 = vrot.slane %v164, 2
        %v166 = vadd.f32 %v164, %v165
        %v167 = vrot.slane %v166, 1
        %v168 = vadd.f32 %v166, %v167
        %s169 = vtos %v168
        %170 = vrot.lane.b32.xlu0 %v133, 1
        %v171 = vpop.permute.xlu0 %170
        %172 = vrot.lane.b32.xlu0 %v134, 1
        %v173 = vpop.permute.xlu0 %172
        %vm174 = vcmask 7168
        %v175 = vsel %vm174, %v171, %v173
        %v178 = vsub.f32 %v133, %v171
        %v179 = vsub.f32 %v134, %v175
        %v180 = vlaneseq
        %v181 = vand.u32 %v180, 127
        %v182 = vadd.s32 %v181, 128
        %vm183 = vcmp.lt.s32.totalorder %v181, 0
        %v184 = vsub.s32 0, %v181
        %v185 = vsel %vm183, %v184, %v181
        %v186 = vshrl.u32 %v185, 4
        %v187 = vand.u32 %v185, 15
        %v188 = vsub.s32 0, %v187
        %v189 = vsel %vm183, %v188, %v187
        %vm190 = vcmp.lt.s32.totalorder %v182, 0
        %v191 = vsub.s32 0, %v182
        %v192 = vsel %vm190, %v191, %v182
        %v193 = vshrl.u32 %v192, 4
        %v194 = vand.u32 %v192, 15
        %v195 = vsub.s32 0, %v194
        %v196 = vsel %vm190, %v195, %v194
        %vm197 = vcmp.ne.s32.totalorder %v189, 0
        %vm198 = vcmp.ne.s32.totalorder %v196, 0
        %vm199 = vcmp.lt.s32.totalorder %v189, 0
        %vm200 = vcmp.lt.s32.totalorder %v196, 0
        %vm201 = vmand %vm199, %vm197
        %vm202 = vmand %vm200, %vm198
        %v203 = vadd.s32 %v189, 16
        %v204 = vadd.s32 %v196, 16
        %v205 = vsel %vm201, %v203, %v189
        %v206 = vsel %vm202, %v204, %v196
        %vm207 = vcmp.ne.s32.totalorder %v205, 15
        %vm208 = vcmp.ne.s32.totalorder %v206, 15
        %211 = vrot.lane.b32.xlu0 %v178, 127
        %v212 = vpop.permute.xlu0 %211
        %213 = vrot.lane.b32.xlu0 %v179, 127
        %v214 = vpop.permute.xlu0 %213
        %vm215 = vcmask 1039360
        %v216 = vsel %vm215, %v212, %v214
        %v219 = vsel %vm207, %v216, 0.0
        %v220 = vsel %vm208, %v214, 0.0
        %v221 = vmul.f32 %v219, %v219
        %v222 = vmul.f32 %v220, %v220
        %v223 = vsel %vm215, %v222, 0.0
        %v224 = vadd.f32 %v221, %v223
        %225 = vadd.xlane.f32.xlu0 %v224
        %v226 = vpop.xlane.xlu0 %225
        %v227 = vrot.slane %v226, 4
        %v228 = vadd.f32 %v226, %v227
        %v229 = vrot.slane %v228, 2
        %v230 = vadd.f32 %v228, %v229
        %v231 = vrot.slane %v230, 1
        %v232 = vadd.f32 %v230, %v231
        %s233 = vtos %v232
        %v234 = vstv %s169
        %v235 = vstv %s233
        %vm236 = vcmask 1040384
        %v237 = vsel %vm236, %v234, %v235
        %238 = vst [vmem:[%s132] sm:$0x3] %v237
        %s239 = sand.u32 %s52, 1
        %s240 = scalar_lea.sflag [#allocation4], %s239
        %s241 = sand.u32 %s52, 1
        %s242 = smul.addr %s241, 2
        %s243 = scalar_lea.vmem [#allocation5], %s242
        // Predicated region
        $region29: #{tpu_custom_call.1} parent=23 // pred_check
          %p244 = pneg %p62
        $region30: #{tpu_custom_call.1} parent=23 // pred_check_branch
          %246 = sbr.rel (%p244) target = $region32
        $region31: #{tpu_custom_call.1} parent=23 // pred_region
          %s248 = ssub.s32 32, 32
          %249 = vsyncadd %s240, %s248
          %s250 = smul.addr %s18, 32
          %s251 = scalar_lea.hbm %s1, %s250
          %s253 = sshll.u32 %s243, 4
          %s254 = int_to_ptr.vmem [resolvable:$true] %s253
          %256 = dma.vmem_to_hbm [thread:$0]  %s254, 32, %s251, %s240
        $region32: #{tpu_custom_call.1} parent=23 // pred_fallthru
          _
      $region24: #{tpu_custom_call.1} parent=5 // pred_fallthru
        _
      %p257 = scmp.le.s32.totalorder 2, %s13
      // Predicated region
      $region33: #{tpu_custom_call.1} parent=5 // pred_check
        %p258 = pneg %p257
      $region34: #{tpu_custom_call.1} parent=5 // pred_check_branch
        %260 = sbr.rel (%p258) target = $region36
      $region35: #{tpu_custom_call.1} parent=5 // pred_region
        %s261 = ssub.s32 %s13, 2
        // Predicated region
        $region37: #{tpu_custom_call.1} parent=35 // pred_check
          %p262 = pneg %p68
        $region38: #{tpu_custom_call.1} parent=35 // pred_check_branch
          %264 = sbr.rel (%p262) target = $region40
        $region39: #{tpu_custom_call.1} parent=35 // pred_region
          %s265 = sand.u32 %s53, 1
          %s266 = scalar_lea.sflag [#allocation4], %s265
          %s267 = sand.u32 %s53, 1
          %s268 = smul.addr %s267, 2
          %s269 = scalar_lea.vmem [#allocation5], %s268
          %270 = dma.done %s266, 32
        $region40: #{tpu_custom_call.1} parent=35 // pred_fallthru
          _
      $region36: #{tpu_custom_call.1} parent=5 // pred_fallthru
        _
    $region6: #{tpu_custom_call.1} parent=1 // loop_footer
      %s17 = sadd.s32 1, %s13
    $region7: #{tpu_custom_call.1} parent=1 // loop_footer_branch
      %12 = sbr.rel target = $region3
    $region8: #{tpu_custom_call.1} parent=1 // loop_exit
      _
    %271 = vsyncpa [#allocation3], 1
    %s272 = scalar_lea.sflag [#allocation3], 1
    %273 = vsyncpa %s272, 1
    %274 = vsyncpa [#allocation4], 1
    %s275 = scalar_lea.sflag [#allocation4], 1
    %276 = vsyncpa %s275, 1

</llo_original>
